<compile_context>
chip_gen: v6e
topology: v6e:2x2x1
jax: 0.10.0
libtpu: 0.0.40
codegen_flags: <defaults>
</compile_context>

<pallas_src>
import math

import jax
import jax.numpy as jnp
import numpy as np
from jax.experimental import pallas as pl
from jax.experimental.pallas import tpu as pltpu


# ----------------------------------------------------------------------------
# Kernels
# ----------------------------------------------------------------------------

def _scale_kernel(x_ref, o_ref):
    # x_ref: (tr, L) uint8 tile, o_ref: (tr, L) float32 tile.  Pure VPU.
    o_ref[...] = x_ref[...].astype(jnp.float32) / jnp.float32(255.0)


def _make_rgba_kernel(byte0_is_lsb: bool):
    # x_ref: (tr, L) int32 tile of packed u8x4 pixels,
    # o_ref: (4, tr, L) float32 tile (channel-planar, lane-dense).
    if byte0_is_lsb:
        shifts = [0, 8, 16, 24]
    else:
        shifts = [24, 16, 8, 0]

    def kernel(x_ref, o_ref):
        u = x_ref[...]
        for c in range(4):
            ch = (u >> shifts[c]) & 0xFF            # int32 in [0, 255]
            o_ref[c] = ch.astype(jnp.float32) / jnp.float32(255.0)

    return kernel


# ----------------------------------------------------------------------------
# Tiling helpers
# ----------------------------------------------------------------------------

def _choose_lanes(n: int):
    """Lane width for a lane-dense 2D view (rows, lanes) with rows*lanes == n."""
    if n <= 0:
        return None
    best = None
    # Prefer divisors that are multiples of 128 (unmasked full-width stores).
    for lanes in range(128, min(n, 8192) + 1, 128):
        if n % lanes == 0 and (best is None or abs(lanes - 1024) < abs(best - 1024)):
            best = lanes
    if best is not None:
        return best
    # Otherwise any divisor in [128, 8192]; the block spans the full lane
    # extent (always legal), only the final partial vreg column is masked.
    for lanes in range(128, min(n, 8192) + 1):
        if n % lanes == 0 and (best is None or abs(lanes - 1024) < abs(best - 1024)):
            best = lanes
    if best is not None:
        return best
    return n if n <= 8192 else None


def _target_f32_block_bytes() -> int:
    """Per-generation f32 output block target: keeps the double-buffered
    in+out footprint under each generation's default scoped-VMEM limit."""
    kind = ""
    try:
        kind = jax.devices()[0].device_kind.lower()
    except Exception:
        pass
    if "v6" in kind or "trillium" in kind:
        return 8 * 1024 * 1024     # 128 MiB VMEM / 32 MiB scoped: 2*(8+2)=20 MiB
    if "v5 lite" in kind or "v5lite" in kind or "v5e" in kind:
        return 2 * 1024 * 1024     # 16 MiB scoped default: 2*(2+0.5)=5 MiB
    return 4 * 1024 * 1024         # v7x (64 MiB, 2 TCs) & unknown: 2*(4+1)=10 MiB


def _pick_row_tile(rows: int, out_row_bytes: int, target_bytes: int) -> int:
    """Rows per grid step: multiple of 32 (u8 sublane tile) or full extent;
    >= 2 and preferably an even number of steps so v7x's two TensorCores split
    the parallel grid axis evenly."""
    if rows <= 64:
        return rows
    tr = max(32, min(rows, (target_bytes // max(out_row_bytes, 1)) // 32 * 32))
    steps = math.ceil(rows / tr)
    if steps == 1:
        tr = min(rows, math.ceil(math.ceil(rows / 2) / 32) * 32)
        steps = math.ceil(rows / tr)
    if steps > 1 and steps % 2 == 1:
        cand = max(32, min(rows, math.ceil(math.ceil(rows / (steps + 1)) / 32) * 32))
        if math.ceil(rows / cand) % 2 == 0:
            tr = cand
    return tr


def _compiler_params():
    return pltpu.CompilerParams(dimension_semantics=("parallel",))


# ----------------------------------------------------------------------------
# Byte-order probe for the fused RGBA path (executed once, eagerly)
# ----------------------------------------------------------------------------

_BYTE0_IS_LSB = None


def _bitcast_byte0_is_lsb():
    """True if byte 0 of a u8x4 group lands in the LOW bits of the bitcast
    int32, False if in the high bits, None if undeterminable (caller then
    falls back to the unfused path)."""
    global _BYTE0_IS_LSB
    if _BYTE0_IS_LSB is None:
        try:
            probe = jax.lax.bitcast_convert_type(
                jnp.array([1, 2, 3, 4], dtype=jnp.uint8), jnp.int32)
            val = int(jax.device_get(probe))
            if val == 0x04030201:
                _BYTE0_IS_LSB = True
            elif val == 0x01020304:
                _BYTE0_IS_LSB = False
            else:
                _BYTE0_IS_LSB = -1
        except Exception:
            _BYTE0_IS_LSB = -1
    return None if _BYTE0_IS_LSB == -1 else _BYTE0_IS_LSB


# ----------------------------------------------------------------------------
# Wrappers
# ----------------------------------------------------------------------------

def _scale_lane_dense(x_flat_u8, n):
    """Lane-dense streaming u8 -> f32/255 over a flat (already CHW) buffer."""
    lanes = _choose_lanes(n)
    if lanes is None:
        return None
    rows = n // lanes
    tr = _pick_row_tile(rows, 4 * lanes, _target_f32_block_bytes())
    grid = (math.ceil(rows / tr),)
    return pl.pallas_call(
        _scale_kernel,
        out_shape=jax.ShapeDtypeStruct((rows, lanes), jnp.float32),
        grid_spec=pltpu.PrefetchScalarGridSpec(
            num_scalar_prefetch=0,
            grid=grid,
            in_specs=[pl.BlockSpec((tr, lanes), lambda r: (r, 0))],
            out_specs=pl.BlockSpec((tr, lanes), lambda r: (r, 0)),
        ),
        compiler_params=_compiler_params(),
        cost_estimate=pl.CostEstimate(flops=2 * n, transcendentals=0,
                                      bytes_accessed=5 * n),
    )(x_flat_u8.reshape(rows, lanes))


def _preprocess_rgba_fused(x_hwc_u8):
    """Fused HWC->CHW + /255 for C == 4 via a packed-u8x4 bitcast de-interleave."""
    byte0_is_lsb = _bitcast_byte0_is_lsb()
    if byte0_is_lsb is None:
        return None
    H, W, _ = x_hwc_u8.shape
    n_pix = H * W
    lanes = _choose_lanes(n_pix)
    if lanes is None:
        return None
    rows = n_pix // lanes
    # One grid row produces 4 channel-rows of f32 output (16 B per pixel-lane).
    tr = _pick_row_tile(rows, 16 * lanes, _target_f32_block_bytes())
    grid = (math.ceil(rows / tr),)
    # Free bitcast: (H*W, 4) u8 row-major  ->  (H*W,) packed 32-bit pixels.
    x_u32 = jax.lax.bitcast_convert_type(x_hwc_u8.reshape(n_pix, 4), jnp.int32)
    out3d = pl.pallas_call(
        _make_rgba_kernel(byte0_is_lsb),
        out_shape=jax.ShapeDtypeStruct((4, rows, lanes), jnp.float32),
        grid_spec=pltpu.PrefetchScalarGridSpec(
            num_scalar_prefetch=0,
            grid=grid,
            in_specs=[pl.BlockSpec((tr, lanes), lambda r: (r, 0))],
            out_specs=pl.BlockSpec((4, tr, lanes), lambda r: (0, r, 0)),
        ),
        compiler_params=_compiler_params(),
        cost_estimate=pl.CostEstimate(flops=8 * n_pix, transcendentals=0,
                                      bytes_accessed=20 * n_pix),
    )(x_u32.reshape(rows, lanes))
    return out3d.reshape(4, H, W)


def preprocess(x_u8: jax.Array) -> jax.Array:
    """uint8 HWC (or HW) image -> CHW float32 image in [0, 1].

    Equivalent to kornia.image_to_tensor(np.array(pil), keepdim=True).float()/255.
    """
    if x_u8.dtype != jnp.uint8:
        x_u8 = x_u8.astype(jnp.uint8)

    if x_u8.ndim == 2:                                  # grayscale -> (1, H, W)
        x_chw = x_u8[None]
        C, H, W = x_chw.shape
    else:
        assert x_u8.ndim == 3, "expected an HWC (or HW) uint8 image"
        H, W, C = x_u8.shape
        if C == 4:
            out = _preprocess_rgba_fused(x_u8)
            if out is not None:
                return out
        # Layout glue (HWC -> CHW) on uint8 -- the cheapest place for it.
        # TODO(synk): drop this transpose once the producer can deliver
        # channel-planar (CHW) pixels; it is one extra u8 read+write pass.
        x_chw = jnp.transpose(x_u8, (2, 0, 1))

    n = C * H * W
    out2d = _scale_lane_dense(x_chw.reshape(n), n)
    if out2d is not None:
        return out2d.reshape(C, H, W)

    # Last-resort fallback for pathological sizes (no divisor of n in
    # [128, 8192]): 2D (C*H, W) view.  Correct, just narrow-lane stores.
    rows, lanes = C * H, W
    tr = _pick_row_tile(rows, 4 * lanes, _target_f32_block_bytes())
    out2d = pl.pallas_call(
        _scale_kernel,
        out_shape=jax.ShapeDtypeStruct((rows, lanes), jnp.float32),
        grid_spec=pltpu.PrefetchScalarGridSpec(
            num_scalar_prefetch=0,
            grid=(math.ceil(rows / tr),),
            in_specs=[pl.BlockSpec((tr, lanes), lambda r: (r, 0))],
            out_specs=pl.BlockSpec((tr, lanes), lambda r: (r, 0)),
        ),
        compiler_params=_compiler_params(),
        cost_estimate=pl.CostEstimate(flops=2 * n, transcendentals=0,
                                      bytes_accessed=5 * n),
    )(x_chw.reshape(rows, lanes))
    return out2d.reshape(C, H, W)


# ----------------------------------------------------------------------------
# Self-test
# ----------------------------------------------------------------------------

def _reference(x_u8: np.ndarray) -> np.ndarray:
    x = np.asarray(x_u8)
    x = x[None] if x.ndim == 2 else np.transpose(x, (2, 0, 1))
    return x.astype(np.float32) / np.float32(255.0)


def _check(x_u8: jax.Array) -> None:
    out = jax.block_until_ready(preprocess(x_u8))
    ref = _reference(np.asarray(jax.device_get(x_u8)))
    assert out.shape == ref.shape, (out.shape, ref.shape)
    assert out.dtype == jnp.float32, out.dtype
    np.testing.assert_allclose(np.asarray(out), ref, rtol=1e-6, atol=1e-6)


if __name__ == "__main__":
    key = jax.random.PRNGKey(0)
    k0, k1, k2, k3 = jax.random.split(key, 4)

    def rand_u8(k, shape):
        return jax.random.randint(k, shape, 0, 256, dtype=jnp.int32).astype(jnp.uint8)

    # RGBA image: fused bitcast de-interleave path (no standalone transpose).
    _check(rand_u8(k0, (16, 16, 4)))
    # Canonical small RGB "PIL image": transpose + lane-dense single-step path.
    _check(rand_u8(k1, (16, 16, 3)))
    # Awkward size: lanes is a non-128-multiple divisor (full-extent block).
    _check(rand_u8(k2, (40, 50, 3)))
    # Ragged multi-step lane-dense path (rows % row_tile != 0, even step count).
    _check(rand_u8(k3, (172, 128, 3)))

    print("KERNEL_OK")
</pallas_src>

<mosaic_0001>
module attributes {stable_mosaic.version = 11 : i64} {
  func.func @kernel(%arg0: i32, %arg1: memref<1x256xi32, #tpu.memory_space<vmem>>, %arg2: memref<4x1x256xf32, #tpu.memory_space<vmem>>) attributes {dimension_semantics = [#tpu.dimension_semantics<parallel>], iteration_bounds = array<i64: 1>, scalar_prefetch = 0 : i64, scratch_operands = 0 : i64, tpu.core_type = #tpu.core_type<tc>, window_params = [{transform_indices = @transform_0, window_bounds = array<i64: 1, 256>}, {transform_indices = @transform_1, window_bounds = array<i64: 4, 1, 256>}]} {
    %c0 = arith.constant 0 : index
    %c0_0 = arith.constant 0 : index
    %0 = vector.load %arg1[%c0, %c0_0] : memref<1x256xi32, #tpu.memory_space<vmem>>, vector<1x256xi32>
    %c0_i32 = arith.constant 0 : i32
    %1 = vector.broadcast %c0_i32 : i32 to vector<1x256xi32>
    %2 = arith.shrsi %0, %1 : vector<1x256xi32>
    %c255_i32 = arith.constant 255 : i32
    %3 = vector.broadcast %c255_i32 : i32 to vector<1x256xi32>
    %4 = arith.andi %2, %3 : vector<1x256xi32>
    %5 = arith.sitofp %4 : vector<1x256xi32> to vector<1x256xf32>
    %cst = arith.constant 2.550000e+02 : f32
    %6 = vector.broadcast %cst : f32 to vector<1x256xf32>
    %7 = arith.divf %5, %6 : vector<1x256xf32>
    %c0_1 = arith.constant 0 : index
    %c0_2 = arith.constant 0 : index
    %c0_3 = arith.constant 0 : index
    %8 = vector.load %arg2[%c0_1, %c0_2, %c0_3] : memref<4x1x256xf32, #tpu.memory_space<vmem>>, vector<1x1x256xf32>
    %9 = vector.shape_cast %8 : vector<1x1x256xf32> to vector<1x256xf32>
    %10 = vector.shape_cast %7 : vector<1x256xf32> to vector<1x1x256xf32>
    tpu.vector_store %arg2[%c0_1, %c0_2, %c0_3], %10 {strides = array<i32>} : memref<4x1x256xf32, #tpu.memory_space<vmem>>, vector<1x1x256xf32>,
    %c8_i32 = arith.constant 8 : i32
    %11 = vector.broadcast %c8_i32 : i32 to vector<1x256xi32>
    %12 = arith.shrsi %0, %11 : vector<1x256xi32>
    %c255_i32_4 = arith.constant 255 : i32
    %13 = vector.broadcast %c255_i32_4 : i32 to vector<1x256xi32>
    %14 = arith.andi %12, %13 : vector<1x256xi32>
    %15 = arith.sitofp %14 : vector<1x256xi32> to vector<1x256xf32>
    %cst_5 = arith.constant 2.550000e+02 : f32
    %16 = vector.broadcast %cst_5 : f32 to vector<1x256xf32>
    %17 = arith.divf %15, %16 : vector<1x256xf32>
    %c1 = arith.constant 1 : index
    %c0_6 = arith.constant 0 : index
    %c0_7 = arith.constant 0 : index
    %18 = vector.load %arg2[%c1, %c0_6, %c0_7] : memref<4x1x256xf32, #tpu.memory_space<vmem>>, vector<1x1x256xf32>
    %19 = vector.shape_cast %18 : vector<1x1x256xf32> to vector<1x256xf32>
    %20 = vector.shape_cast %17 : vector<1x256xf32> to vector<1x1x256xf32>
    tpu.vector_store %arg2[%c1, %c0_6, %c0_7], %20 {strides = array<i32>} : memref<4x1x256xf32, #tpu.memory_space<vmem>>, vector<1x1x256xf32>,
    %c16_i32 = arith.constant 16 : i32
    %21 = vector.broadcast %c16_i32 : i32 to vector<1x256xi32>
    %22 = arith.shrsi %0, %21 : vector<1x256xi32>
    %c255_i32_8 = arith.constant 255 : i32
    %23 = vector.broadcast %c255_i32_8 : i32 to vector<1x256xi32>
    %24 = arith.andi %22, %23 : vector<1x256xi32>
    %25 = arith.sitofp %24 : vector<1x256xi32> to vector<1x256xf32>
    %cst_9 = arith.constant 2.550000e+02 : f32
    %26 = vector.broadcast %cst_9 : f32 to vector<1x256xf32>
    %27 = arith.divf %25, %26 : vector<1x256xf32>
    %c2 = arith.constant 2 : index
    %c0_10 = arith.constant 0 : index
    %c0_11 = arith.constant 0 : index
    %28 = vector.load %arg2[%c2, %c0_10, %c0_11] : memref<4x1x256xf32, #tpu.memory_space<vmem>>, vector<1x1x256xf32>
    %29 = vector.shape_cast %28 : vector<1x1x256xf32> to vector<1x256xf32>
    %30 = vector.shape_cast %27 : vector<1x256xf32> to vector<1x1x256xf32>
    tpu.vector_store %arg2[%c2, %c0_10, %c0_11], %30 {strides = array<i32>} : memref<4x1x256xf32, #tpu.memory_space<vmem>>, vector<1x1x256xf32>,
    %c24_i32 = arith.constant 24 : i32
    %31 = vector.broadcast %c24_i32 : i32 to vector<1x256xi32>
    %32 = arith.shrsi %0, %31 : vector<1x256xi32>
    %c255_i32_12 = arith.constant 255 : i32
    %33 = vector.broadcast %c255_i32_12 : i32 to vector<1x256xi32>
    %34 = arith.andi %32, %33 : vector<1x256xi32>
    %35 = arith.sitofp %34 : vector<1x256xi32> to vector<1x256xf32>
    %cst_13 = arith.constant 2.550000e+02 : f32
    %36 = vector.broadcast %cst_13 : f32 to vector<1x256xf32>
    %37 = arith.divf %35, %36 : vector<1x256xf32>
    %c3 = arith.constant 3 : index
    %c0_14 = arith.constant 0 : index
    %c0_15 = arith.constant 0 : index
    %38 = vector.load %arg2[%c3, %c0_14, %c0_15] : memref<4x1x256xf32, #tpu.memory_space<vmem>>, vector<1x1x256xf32>
    %39 = vector.shape_cast %38 : vector<1x1x256xf32> to vector<1x256xf32>
    %40 = vector.shape_cast %37 : vector<1x256xf32> to vector<1x1x256xf32>
    tpu.vector_store %arg2[%c3, %c0_14, %c0_15], %40 {strides = array<i32>} : memref<4x1x256xf32, #tpu.memory_space<vmem>>, vector<1x1x256xf32>,
    return
  }
  func.func @transform_0(%arg0: i32) -> (i32, i32) {
    %c0_i32 = arith.constant 0 : i32
    %c0_i32_0 = arith.constant 0 : i32
    return %arg0, %c0_i32 : i32, i32
  }
  func.func @transform_1(%arg0: i32) -> (i32, i32, i32) {
    %c0_i32 = arith.constant 0 : i32
    %c0_i32_0 = arith.constant 0 : i32
    %c0_i32_1 = arith.constant 0 : i32
    return %c0_i32, %arg0, %c0_i32_0 : i32, i32, i32
  }
}

</mosaic_0001>

<llo_original>
// kernel: tpu_custom_call.1
$region0: #{tpu_custom_call.1}
  #allocation0 [shape = 'u32[]', space=smem, size = 0x4, offset = 0x4, fixed_abs, tag = 'smem constant byte address 0x4 - core index']
  #allocation1 [shape = 'u32[144,128]{1,0:T(1,128)}', space=vmem, size = 0x12000, scoped, tag = 'internal scratch']
  %s0 = inlined_call_operand.hbm [shape: s32[1,256], index: 0, kind: input, shape index: {}]
  %s1 = inlined_call_operand.hbm [shape: f32[4,1,256], index: 1, kind: output, shape index: {}]
  %s2 = sld [smem:[#allocation0]]
  $region18: #{tpu_custom_call.1} parent=0
    _
  %s4 = ssub.s32 1, %s2
  %s5 = scalar_select 0, %s4, %s2
  $region1: #{tpu_custom_call.1} parent=0
    #allocation2 [shape = 'u8[1024]{0}', space=vmem, size = 0x400, scoped, tag = 'input window, operand 0, single buffered']
    #allocation3 [shape = 's32[1]{0}', space=sflag, size = 0x4, scoped, tag = 'scoped memory for tpu_custom_call.1']
    #allocation4 [shape = 's32[1]{0}', space=sflag, size = 0x4, scoped, tag = 'scoped memory for tpu_custom_call.1']
    #allocation5 [shape = 'u8[4096]{0}', space=vmem, size = 0x1000, scoped, tag = 'output window, operand 0, single buffered']
    %6 = vsyncpa [#allocation3], 0
    %7 = vsyncpa [#allocation4], 0
    // Predicated region
    $region2: #{tpu_custom_call.1} parent=1 // pred_check
      _
    $region3: #{tpu_custom_call.1} parent=1 // pred_check_branch
      %9 = sbr.rel (0) target = $region5
    $region4: #{tpu_custom_call.1} parent=1 // pred_region
      %s11 = ssub.s32 32, 32
      %12 = vsyncadd [#allocation3], %s11
      %s14 = sshll.u32 [#allocation2], 4
      %s15 = int_to_ptr.vmem [resolvable:$true] %s14
      %17 = dma.hbm_to_vmem [thread:$0]  %s0, 32, %s15, [#allocation3]
    $region5: #{tpu_custom_call.1} parent=1 // pred_fallthru
      _
    // Predicated region
    $region6: #{tpu_custom_call.1} parent=1 // pred_check
      _
    $region7: #{tpu_custom_call.1} parent=1 // pred_check_branch
      %19 = sbr.rel (0) target = $region9
    $region8: #{tpu_custom_call.1} parent=1 // pred_region
      %20 = dma.done [#allocation3], 32
    $region9: #{tpu_custom_call.1} parent=1 // pred_fallthru
      _
    %v21 = vld [vmem:[#allocation2] sm:$0x3]
    %v22 = vand.u32 %v21, 255
    %v23 = vcvt.s32.f32 %v22
    %v24 = vrcp.pop 255.0
    %v25 = vmul.f32 %v23, %v24
    %v26 = vlaneseq
    %vm27 = vcmp.ge.s32.totalorder %v26, 0
    %vm28 = vcmp.lt.s32.totalorder %v26, 256
    %vm29 = vmand %vm27, %vm28
    %30 = vst.msk [vmem:[#allocation5] sm:$0x3] %vm29, %v25
    %v31 = vshra.s32 %v21, 8
    %v32 = vand.u32 %v31, 255
    %v33 = vcvt.s32.f32 %v32
    %v34 = vmul.f32 %v33, %v24
    %s35 = scalar_lea.vmem [#allocation5], 2
    %36 = vst.msk [vmem:[%s35] sm:$0x3] %vm29, %v34
    %v37 = vshra.s32 %v21, 16
    %v38 = vand.u32 %v37, 255
    %v39 = vcvt.s32.f32 %v38
    %v40 = vmul.f32 %v39, %v24
    %s41 = scalar_lea.vmem [#allocation5], 4
    %42 = vst.msk [vmem:[%s41] sm:$0x3] %vm29, %v40
    %v43 = vshra.s32 %v21, 24
    %v44 = vand.u32 %v43, 255
    %v45 = vcvt.s32.f32 %v44
    %v46 = vmul.f32 %v45, %v24
    %s47 = scalar_lea.vmem [#allocation5], 6
    %48 = vst.msk [vmem:[%s47] sm:$0x3] %vm29, %v46
    // Predicated region
    $region10: #{tpu_custom_call.1} parent=1 // pred_check
      _
    $region11: #{tpu_custom_call.1} parent=1 // pred_check_branch
      %50 = sbr.rel (0) target = $region13
    $region12: #{tpu_custom_call.1} parent=1 // pred_region
      %s52 = ssub.s32 128, 128
      %53 = vsyncadd [#allocation4], %s52
      %s54 = sshll.u32 [#allocation5], 4
      %s55 = int_to_ptr.vmem [resolvable:$true] %s54
      %60 = dma.vmem_to_hbm [thread:$0]  %s55, 128, %s1, [#allocation4], 32, 32, 2
    $region13: #{tpu_custom_call.1} parent=1 // pred_fallthru
      _
    // Predicated region
    $region14: #{tpu_custom_call.1} parent=1 // pred_check
      _
    $region15: #{tpu_custom_call.1} parent=1 // pred_check_branch
      %62 = sbr.rel (0) target = $region17
    $region16: #{tpu_custom_call.1} parent=1 // pred_region
      %63 = dma.done [#allocation4], 128
    $region17: #{tpu_custom_call.1} parent=1 // pred_fallthru
      _
    %64 = vsyncpa [#allocation3], 1
    %65 = vsyncpa [#allocation4], 1

</llo_original>
